<compile_context>
chip_gen: v5e
topology: v5e:2x2
jax: 0.10.0
libtpu: 0.0.40
codegen_flags: <defaults>
</compile_context>

<pallas_src>
import functools

import jax
import jax.numpy as jnp
import numpy as np
from jax.experimental import pallas as pl
from jax.experimental.pallas import tpu as pltpu

IN_F = 9        # tic-tac-toe board cells
IN_K = 16       # padded layer-1 contraction dim (bf16 sublane multiple)
HID = 256
OUT_F = 9
OUT_PAD = 128   # lane-dense output slab (logits in lanes 0..8)


def dqn_kernel(x_ref, w1_ref, b1_ref, w2_ref, b2_ref, w3_ref, b3_ref, o_ref):
    # x tile: (TB, 16) bf16; weights bf16; biases f32; f32 MXU accumulation.
    h1 = jnp.dot(x_ref[...], w1_ref[...],
                 preferred_element_type=jnp.float32)                   # (TB, 256)
    h1 = jnp.maximum(h1 + b1_ref[...], 0.0)                            # f32 ReLU
    h2 = jnp.dot(h1.astype(jnp.bfloat16), w2_ref[...],
                 preferred_element_type=jnp.float32)                   # (TB, 256)
    h2 = jnp.maximum(h2 + b2_ref[...], 0.0)                            # f32 ReLU
    out = jnp.dot(h2.astype(jnp.bfloat16), w3_ref[...],
                  preferred_element_type=jnp.float32)                  # (TB, 128)
    o_ref[...] = (out + b3_ref[...]).astype(o_ref.dtype)               # bf16 store


def _round_up(x, m):
    return ((x + m - 1) // m) * m


@functools.partial(jax.jit, static_argnames=("tile_b",))
def dqn_forward(x, kparams, tile_b=512):
    """x: (B, 9) float32 boards. kparams: padded, bf16-weight kernel params."""
    w1, b1, w2, b2, w3, b3 = kparams
    B = x.shape[0]

    tile_b = _round_up(tile_b, 16)
    # Cap TB at ceil(B/2) (rounded to 16) so the grid has >= 2 steps whenever
    # possible -> both v7x TensorCores get work via "parallel" semantics.
    half = (B + 1) // 2
    TB = min(tile_b, _round_up(half, 16))          # batch tile, multiple of 16
    Bp = _round_up(B, TB)                          # padded batch

    # Narrow bf16 input slab: board in lanes 0..8, zeros in 9..15 (required
    # since w1 is (16, 256)); padded batch rows are zero.
    xp = jnp.zeros((Bp, IN_K), jnp.bfloat16).at[:B, :IN_F].set(
        x.astype(jnp.bfloat16))

    grid = (Bp // TB,)
    resident = lambda shape: pl.BlockSpec(shape, lambda i: (0, 0))  # stays in VMEM

    flops = 2 * Bp * (IN_K * HID + HID * HID + HID * OUT_PAD)
    bytes_accessed = (xp.size * 2 + Bp * OUT_PAD * 2
                      + (w1.size + w2.size + w3.size) * 2
                      + (b1.size + b2.size + b3.size) * 4)

    out_padded = pl.pallas_call(
        dqn_kernel,
        out_shape=jax.ShapeDtypeStruct((Bp, OUT_PAD), jnp.bfloat16),
        grid=grid,
        in_specs=[
            pl.BlockSpec((TB, IN_K), lambda i: (i, 0)),     # x tile (bf16)
            resident((IN_K, HID)),                          # w1 (bf16)
            resident((1, HID)),                             # b1 (f32)
            resident((HID, HID)),                           # w2 (bf16)
            resident((1, HID)),                             # b2 (f32)
            resident((HID, OUT_PAD)),                       # w3 (bf16)
            resident((1, OUT_PAD)),                         # b3 (f32)
        ],
        out_specs=pl.BlockSpec((TB, OUT_PAD), lambda i: (i, 0)),
        compiler_params=pltpu.CompilerParams(
            dimension_semantics=("parallel",),
            # Let XLA fuse the tiny pad/cast producer of xp into the call
            # instead of materializing it in HBM.
            allow_input_fusion=[True, False, False, False, False, False, False],
        ),
        cost_estimate=pl.CostEstimate(
            flops=flops, transcendentals=0, bytes_accessed=bytes_accessed),
    )(xp, w1, b1, w2, b2, w3, b3)

    # Slice out the 9 real logits; return f32 to match the PyTorch interface.
    return out_padded[:B, :OUT_F].astype(jnp.float32)


def init_params(key):
    """Deterministic init mimicking PyTorch nn.Linear default:
    U(-1/sqrt(fan_in), 1/sqrt(fan_in)) for both weight and bias.
    Stored as (in, out) -- transposed relative to PyTorch's (out, in)."""
    dims = [(IN_F, HID), (HID, HID), (HID, OUT_F)]
    params = []
    for fan_in, fan_out in dims:
        key, kw, kb = jax.random.split(key, 3)
        bound = 1.0 / np.sqrt(fan_in)
        w = jax.random.uniform(kw, (fan_in, fan_out), jnp.float32, -bound, bound)
        b = jax.random.uniform(kb, (1, fan_out), jnp.float32, -bound, bound)
        params.extend([w, b])
    return tuple(params)


def prepare_kernel_params(params):
    """Pad to kernel shapes and cast weights to bf16 (biases stay f32)."""
    w1, b1, w2, b2, w3, b3 = params
    w1p = jnp.zeros((IN_K, HID), jnp.float32).at[:IN_F, :].set(w1).astype(jnp.bfloat16)
    w2p = w2.astype(jnp.bfloat16)
    w3p = jnp.zeros((HID, OUT_PAD), jnp.float32).at[:, :OUT_F].set(w3).astype(jnp.bfloat16)
    b3p = jnp.zeros((1, OUT_PAD), jnp.float32).at[:, :OUT_F].set(b3)
    return (w1p, b1, w2p, b2, w3p, b3p)


def reference_forward(x, params):
    """Pure-JAX reference with the same bf16-weight / f32-accumulate numerics."""
    w1, b1, w2, b2, w3, b3 = params
    bf = jnp.bfloat16
    h1 = jnp.maximum(
        jnp.dot(x.astype(bf), w1.astype(bf), preferred_element_type=jnp.float32) + b1, 0.0)
    h2 = jnp.maximum(
        jnp.dot(h1.astype(bf), w2.astype(bf), preferred_element_type=jnp.float32) + b2, 0.0)
    return jnp.dot(h2.astype(bf), w3.astype(bf), preferred_element_type=jnp.float32) + b3


# TODO(synk): the Adam optimizer / MSELoss training step of the PyTorch module
# has no Pallas forward-pass equivalent here; only inference is implemented.

if __name__ == "__main__":
    key = jax.random.PRNGKey(0)
    kp, kx1, kx2 = jax.random.split(key, 3)
    params = init_params(kp)
    kparams = prepare_kernel_params(params)

    # Small batch: 2 tic-tac-toe boards, cells in {-1, 0, 1}.
    x_small = jax.random.randint(kx1, (2, 9), -1, 2).astype(jnp.float32)
    out_small = jax.block_until_ready(dqn_forward(x_small, kparams))
    ref_small = reference_forward(x_small, params)
    np.testing.assert_allclose(np.asarray(out_small), np.asarray(ref_small),
                               rtol=2e-2, atol=2e-2)

    # Slightly larger batch exercising a multi-step grid
    # (48 boards -> TB=32, padded 64 -> 2 tiles).
    x_big = jax.random.randint(kx2, (48, 9), -1, 2).astype(jnp.float32)
    out_big = jax.block_until_ready(dqn_forward(x_big, kparams))
    ref_big = reference_forward(x_big, params)
    np.testing.assert_allclose(np.asarray(out_big), np.asarray(ref_big),
                               rtol=2e-2, atol=2e-2)

    print("KERNEL_OK")
</pallas_src>

<mosaic_0001>
module attributes {stable_mosaic.version = 11 : i64} {
  func.func @dqn_kernel(%arg0: i32, %arg1: memref<16x16xbf16, #tpu.memory_space<vmem>>, %arg2: memref<16x256xbf16, #tpu.memory_space<vmem>>, %arg3: memref<1x256xf32, #tpu.memory_space<vmem>>, %arg4: memref<256x256xbf16, #tpu.memory_space<vmem>>, %arg5: memref<1x256xf32, #tpu.memory_space<vmem>>, %arg6: memref<256x128xbf16, #tpu.memory_space<vmem>>, %arg7: memref<1x128xf32, #tpu.memory_space<vmem>>, %arg8: memref<16x128xbf16, #tpu.memory_space<vmem>>) attributes {dimension_semantics = [#tpu.dimension_semantics<parallel>], iteration_bounds = array<i64: 1>, scalar_prefetch = 0 : i64, scratch_operands = 0 : i64, tpu.core_type = #tpu.core_type<tc>, window_params = [{transform_indices = @transform_0, window_bounds = array<i64: 16, 16>}, {pipeline_mode = #tpu.pipeline_mode<synchronous>, transform_indices = @transform_1, window_bounds = array<i64: 16, 256>}, {pipeline_mode = #tpu.pipeline_mode<synchronous>, transform_indices = @transform_2, window_bounds = array<i64: 1, 256>}, {pipeline_mode = #tpu.pipeline_mode<synchronous>, transform_indices = @transform_3, window_bounds = array<i64: 256, 256>}, {pipeline_mode = #tpu.pipeline_mode<synchronous>, transform_indices = @transform_4, window_bounds = array<i64: 1, 256>}, {pipeline_mode = #tpu.pipeline_mode<synchronous>, transform_indices = @transform_5, window_bounds = array<i64: 256, 128>}, {pipeline_mode = #tpu.pipeline_mode<synchronous>, transform_indices = @transform_6, window_bounds = array<i64: 1, 128>}, {transform_indices = @transform_7, window_bounds = array<i64: 16, 128>}]} {
    %c0 = arith.constant 0 : index
    %c0_0 = arith.constant 0 : index
    %0 = vector.load %arg1[%c0, %c0_0] : memref<16x16xbf16, #tpu.memory_space<vmem>>, vector<16x16xbf16>
    %c0_1 = arith.constant 0 : index
    %c0_2 = arith.constant 0 : index
    %1 = vector.load %arg2[%c0_1, %c0_2] : memref<16x256xbf16, #tpu.memory_space<vmem>>, vector<16x256xbf16>
    %cst = arith.constant dense<0.000000e+00> : vector<16x256xf32>
    %2 = tpu.matmul %0, %1, %cst {dimension_numbers = #tpu.dot_dimension_numbers<[1], [0], [0], [1], [0, 0, 1, 1], [], []>} : vector<16x16xbf16>, vector<16x256xbf16>, vector<16x256xf32> -> vector<16x256xf32>
    %c0_3 = arith.constant 0 : index
    %c0_4 = arith.constant 0 : index
    %3 = vector.load %arg3[%c0_3, %c0_4] : memref<1x256xf32, #tpu.memory_space<vmem>>, vector<1x256xf32>
    %4 = vector.broadcast %3 : vector<1x256xf32> to vector<16x256xf32>
    %5 = arith.addf %2, %4 : vector<16x256xf32>
    %cst_5 = arith.constant 0.000000e+00 : f32
    %6 = vector.broadcast %cst_5 : f32 to vector<16x256xf32>
    %7 = arith.maximumf %5, %6 : vector<16x256xf32>
    %8 = arith.truncf %7 : vector<16x256xf32> to vector<16x256xbf16>
    %c0_6 = arith.constant 0 : index
    %c0_7 = arith.constant 0 : index
    %9 = vector.load %arg4[%c0_6, %c0_7] : memref<256x256xbf16, #tpu.memory_space<vmem>>, vector<256x256xbf16>
    %cst_8 = arith.constant dense<0.000000e+00> : vector<16x256xf32>
    %10 = tpu.matmul %8, %9, %cst_8 {dimension_numbers = #tpu.dot_dimension_numbers<[1], [0], [0], [1], [0, 0, 1, 1], [], []>} : vector<16x256xbf16>, vector<256x256xbf16>, vector<16x256xf32> -> vector<16x256xf32>
    %c0_9 = arith.constant 0 : index
    %c0_10 = arith.constant 0 : index
    %11 = vector.load %arg5[%c0_9, %c0_10] : memref<1x256xf32, #tpu.memory_space<vmem>>, vector<1x256xf32>
    %12 = vector.broadcast %11 : vector<1x256xf32> to vector<16x256xf32>
    %13 = arith.addf %10, %12 : vector<16x256xf32>
    %cst_11 = arith.constant 0.000000e+00 : f32
    %14 = vector.broadcast %cst_11 : f32 to vector<16x256xf32>
    %15 = arith.maximumf %13, %14 : vector<16x256xf32>
    %16 = arith.truncf %15 : vector<16x256xf32> to vector<16x256xbf16>
    %c0_12 = arith.constant 0 : index
    %c0_13 = arith.constant 0 : index
    %17 = vector.load %arg6[%c0_12, %c0_13] : memref<256x128xbf16, #tpu.memory_space<vmem>>, vector<256x128xbf16>
    %cst_14 = arith.constant dense<0.000000e+00> : vector<16x128xf32>
    %18 = tpu.matmul %16, %17, %cst_14 {dimension_numbers = #tpu.dot_dimension_numbers<[1], [0], [0], [1], [0, 0, 1, 1], [], []>} : vector<16x256xbf16>, vector<256x128xbf16>, vector<16x128xf32> -> vector<16x128xf32>
    %c0_15 = arith.constant 0 : index
    %c0_16 = arith.constant 0 : index
    %19 = vector.load %arg7[%c0_15, %c0_16] : memref<1x128xf32, #tpu.memory_space<vmem>>, vector<1x128xf32>
    %20 = vector.broadcast %19 : vector<1x128xf32> to vector<16x128xf32>
    %21 = arith.addf %18, %20 : vector<16x128xf32>
    %22 = arith.truncf %21 : vector<16x128xf32> to vector<16x128xbf16>
    %c0_17 = arith.constant 0 : index
    %c0_18 = arith.constant 0 : index
    %23 = vector.load %arg8[%c0_17, %c0_18] : memref<16x128xbf16, #tpu.memory_space<vmem>>, vector<16x128xbf16>
    tpu.vector_store %arg8[%c0_17, %c0_18], %22 {strides = array<i32>} : memref<16x128xbf16, #tpu.memory_space<vmem>>, vector<16x128xbf16>,
    return
  }
  func.func @transform_0(%arg0: i32) -> (i32, i32) {
    %c0_i32 = arith.constant 0 : i32
    %c0_i32_0 = arith.constant 0 : i32
    return %arg0, %c0_i32 : i32, i32
  }
  func.func @transform_1(%arg0: i32) -> (i32, i32) {
    %c0_i32 = arith.constant 0 : i32
    %c0_i32_0 = arith.constant 0 : i32
    %c0_i32_1 = arith.constant 0 : i32
    return %c0_i32, %c0_i32_0 : i32, i32
  }
  func.func @transform_2(%arg0: i32) -> (i32, i32) {
    %c0_i32 = arith.constant 0 : i32
    %c0_i32_0 = arith.constant 0 : i32
    %c0_i32_1 = arith.constant 0 : i32
    return %c0_i32, %c0_i32_0 : i32, i32
  }
  func.func @transform_3(%arg0: i32) -> (i32, i32) {
    %c0_i32 = arith.constant 0 : i32
    %c0_i32_0 = arith.constant 0 : i32
    %c0_i32_1 = arith.constant 0 : i32
    return %c0_i32, %c0_i32_0 : i32, i32
  }
  func.func @transform_4(%arg0: i32) -> (i32, i32) {
    %c0_i32 = arith.constant 0 : i32
    %c0_i32_0 = arith.constant 0 : i32
    %c0_i32_1 = arith.constant 0 : i32
    return %c0_i32, %c0_i32_0 : i32, i32
  }
  func.func @transform_5(%arg0: i32) -> (i32, i32) {
    %c0_i32 = arith.constant 0 : i32
    %c0_i32_0 = arith.constant 0 : i32
    %c0_i32_1 = arith.constant 0 : i32
    return %c0_i32, %c0_i32_0 : i32, i32
  }
  func.func @transform_6(%arg0: i32) -> (i32, i32) {
    %c0_i32 = arith.constant 0 : i32
    %c0_i32_0 = arith.constant 0 : i32
    %c0_i32_1 = arith.constant 0 : i32
    return %c0_i32, %c0_i32_0 : i32, i32
  }
  func.func @transform_7(%arg0: i32) -> (i32, i32) {
    %c0_i32 = arith.constant 0 : i32
    %c0_i32_0 = arith.constant 0 : i32
    return %arg0, %c0_i32 : i32, i32
  }
}

</mosaic_0001>

<llo_original>
// kernel: dqn_forward.2
$region0: #{dqn_forward.2}
  #allocation0 [shape = 'u32[]', space=smem, size = 0x4, offset = 0x4, fixed_abs, tag = 'smem constant byte address 0x4 - core index']
  #allocation1 [shape = 'u32[72,128]{1,0:T(1,128)}', space=vmem, size = 0x9000, scoped, tag = 'internal scratch']
  #allocation2 [shape = 'u32[2048]{0}', space=vmem, size = 0x2000, scoped, tag = 'scoped memory for dqn_forward.2']
  #allocation3 [shape = 'u32[2048]{0}', space=vmem, size = 0x2000, scoped, tag = 'scoped memory for dqn_forward.2']
  #allocation4 [shape = 'u32[2048]{0}', space=vmem, size = 0x2000, scoped, tag = 'scoped memory for dqn_forward.2']
  #allocation5 [shape = 'u32[2048]{0}', space=vmem, size = 0x2000, scoped, tag = 'scoped memory for dqn_forward.2']
  #allocation6 [shape = 'u32[2048]{0}', space=vmem, size = 0x2000, scoped, tag = 'scoped memory for dqn_forward.2']
  %s0 = inlined_call_operand.hbm [shape: bf16[16,256], index: 0, kind: input, shape index: {}]
  %s1 = inlined_call_operand.vmem [shape: f32[1,256], index: 1, kind: input, shape index: {}]
  %s2 = inlined_call_operand.hbm [shape: bf16[256,256], index: 2, kind: input, shape index: {}]
  %s3 = inlined_call_operand.vmem [shape: f32[1,256], index: 3, kind: input, shape index: {}]
  %s4 = inlined_call_operand.hbm [shape: bf16[256,128], index: 4, kind: input, shape index: {}]
  %s5 = inlined_call_operand.vmem [shape: f32[1,128], index: 5, kind: input, shape index: {}]
  %s6 = inlined_call_operand.vmem [shape: bf16[2,9], index: 6, kind: input, shape index: {}]
  %s7 = inlined_call_operand.<no memory space> [shape: bf16[], index: 7, kind: input, shape index: {}]
  %s8 = inlined_call_operand.vmem [shape: bf16[16,128], index: 8, kind: output, shape index: {}]
  %s9 = sld [smem:[#allocation0]]
  $region50: #{dqn_forward.2} parent=0
    _
  %s11 = ssub.s32 1, %s9
  %s12 = scalar_select 0, %s11, %s9
  %v13 = vstv %s7
  %v14 = vunpack.i.l.bf16 %v13
  %v16 = vunpack.i.h.bf16 %v13
  $region1: #{dqn_forward.2} parent=0
    #allocation7 [shape = 'u8[8192]{0}', space=vmem, size = 0x2000, scoped, tag = 'input window, operand 1, single buffered']
    #allocation8 [shape = 's32[1]{0}', space=sflag, size = 0x4, scoped, tag = 'scoped memory for dqn_forward.2']
    #allocation9 [shape = 'u8[131072]{0}', space=vmem, size = 0x20000, scoped, tag = 'input window, operand 3, single buffered']
    #allocation10 [shape = 's32[1]{0}', space=sflag, size = 0x4, scoped, tag = 'scoped memory for dqn_forward.2']
    #allocation11 [shape = 'u8[65536]{0}', space=vmem, size = 0x10000, scoped, tag = 'input window, operand 5, single buffered']
    #allocation12 [shape = 'u8[4096]{0}', space=vmem, size = 0x1000, dematerialized = true, scoped, tag = 'FusionAdapter Buffer %fusion.1 = bf16[16,16]{1,0:T(8,128)(2,1)} fusion(%param_6.1, %param_7), kind=kLoop, calls=%fused_computation.1.clone, metadata={op_name="jit(dqn_forward)/scatter" stack_frame_id=7}']
    %18 = vsyncpa [#allocation8], 0
    %19 = vsyncpa [#allocation10], 0
    // Predicated region
    $region2: #{dqn_forward.2} parent=1 // pred_check
      _
    $region3: #{dqn_forward.2} parent=1 // pred_check_branch
      %21 = sbr.rel (0) target = $region5
    $region4: #{dqn_forward.2} parent=1 // pred_region
      _
    $region5: #{dqn_forward.2} parent=1 // pred_fallthru
      _
    // Predicated region
    $region6: #{dqn_forward.2} parent=1 // pred_check
      _
    $region7: #{dqn_forward.2} parent=1 // pred_check_branch
      %23 = sbr.rel (0) target = $region9
    $region8: #{dqn_forward.2} parent=1 // pred_region
      %25 = vsyncadd [#allocation8], 0
      %s26 = sshll.u32 %s0, 4
      %s27 = int_to_ptr.hbm [resolvable:$true] %s26
      %s28 = sshll.u32 [#allocation7], 4
      %s29 = int_to_ptr.vmem [resolvable:$true] %s28
      %34 = dma.hbm_to_vmem [thread:$0]  %s27, 256, %s29, [#allocation8], 128, 128, 8
    $region9: #{dqn_forward.2} parent=1 // pred_fallthru
      _
    // Predicated region
    $region10: #{dqn_forward.2} parent=1 // pred_check
      _
    $region11: #{dqn_forward.2} parent=1 // pred_check_branch
      %36 = sbr.rel (0) target = $region13
    $region12: #{dqn_forward.2} parent=1 // pred_region
      _
    $region13: #{dqn_forward.2} parent=1 // pred_fallthru
      _
    // Predicated region
    $region14: #{dqn_forward.2} parent=1 // pred_check
      _
    $region15: #{dqn_forward.2} parent=1 // pred_check_branch
      %38 = sbr.rel (0) target = $region17
    $region16: #{dqn_forward.2} parent=1 // pred_region
      %40 = vsyncadd [#allocation10], 0
      %s41 = sshll.u32 %s2, 4
      %s42 = int_to_ptr.hbm [resolvable:$true] %s41
      %s43 = sshll.u32 [#allocation9], 4
      %s44 = int_to_ptr.vmem [resolvable:$true] %s43
      %49 = dma.hbm_to_vmem [thread:$0]  %s42, 4096, %s44, [#allocation10], 128, 128, 8
    $region17: #{dqn_forward.2} parent=1 // pred_fallthru
      _
    // Predicated region
    $region18: #{dqn_forward.2} parent=1 // pred_check
      _
    $region19: #{dqn_forward.2} parent=1 // pred_check_branch
      %51 = sbr.rel (0) target = $region21
    $region20: #{dqn_forward.2} parent=1 // pred_region
      _
    $region21: #{dqn_forward.2} parent=1 // pred_fallthru
      _
    // Predicated region
    $region22: #{dqn_forward.2} parent=1 // pred_check
      _
    $region23: #{dqn_forward.2} parent=1 // pred_check_branch
      %53 = sbr.rel (0) target = $region25
    $region24: #{dqn_forward.2} parent=1 // pred_region
      %55 = vsyncadd [#allocation10], 0
      %s56 = sshll.u32 %s4, 4
      %s57 = int_to_ptr.hbm [resolvable:$true] %s56
      %s58 = sshll.u32 [#allocation11], 4
      %s59 = int_to_ptr.vmem [resolvable:$true] %s58
      %64 = dma.hbm_to_vmem [thread:$0]  %s57, 2048, %s59, [#allocation10], 64, 64, 4
    $region25: #{dqn_forward.2} parent=1 // pred_fallthru
      _
    // Predicated region
    $region26: #{dqn_forward.2} parent=1 // pred_check
      _
    $region27: #{dqn_forward.2} parent=1 // pred_check_branch
      %66 = sbr.rel (0) target = $region29
    $region28: #{dqn_forward.2} parent=1 // pred_region
      _
    $region29: #{dqn_forward.2} parent=1 // pred_fallthru
      _
    // Predicated region
    $region30: #{dqn_forward.2} parent=1 // pred_check
      _
    $region31: #{dqn_forward.2} parent=1 // pred_check_branch
      %68 = sbr.rel (0) target = $region33
    $region32: #{dqn_forward.2} parent=1 // pred_region
      %70 = dma.done [#allocation8], 256
    $region33: #{dqn_forward.2} parent=1 // pred_fallthru
      _
    // Predicated region
    $region34: #{dqn_forward.2} parent=1 // pred_check
      _
    $region35: #{dqn_forward.2} parent=1 // pred_check_branch
      %72 = sbr.rel (0) target = $region37
    $region36: #{dqn_forward.2} parent=1 // pred_region
      %74 = dma.done [#allocation10], 4096
    $region37: #{dqn_forward.2} parent=1 // pred_fallthru
      _
    // Predicated region
    $region38: #{dqn_forward.2} parent=1 // pred_check
      _
    $region39: #{dqn_forward.2} parent=1 // pred_check_branch
      %76 = sbr.rel (0) target = $region41
    $region40: #{dqn_forward.2} parent=1 // pred_region
      %78 = dma.done [#allocation10], 2048
    $region41: #{dqn_forward.2} parent=1 // pred_fallthru
      _
    %s80 = sor.u32 3, 1
    %s81 = sand.u32 %s80, 1
    %v82 = vld [vmem:[%s6] sm:%s81]
    %v83 = vunpack.c.l.bf16 %v82
    %v84 = vunpack.c.h.bf16 %v82
    %v85 = vlaneseq
    %v86 = vshrl.u32 %v85, 7
    %vm88 = vcmp.lt.s32.totalorder %v86, 2
    %v89 = vsel %vm88, %v83, %v14
    %v90 = vlaneseq
    %v91 = vand.u32 %v90, 127
    %vm93 = vcmp.lt.s32.totalorder %v91, 9
    %v94 = vsel %vm93, %v89, %v14
    %v95 = vpack.c.bf16 0.0, %v94
    %s97 = ssub.s32 16, 1
    %98 = vst [vmem:[#allocation12] sm:%s97] %v95
    %s99 = scalar_lea.vmem [#allocation12], 4
    %v100 = vpack.c.bf16 0.0, %v14
    %s102 = ssub.s32 16, 1
    %103 = vst [vmem:[%s99] sm:%s102] %v100
    %v105 = vld [vmem:[#allocation12] sm:$0xf]
    %v106 = vld [vmem:[#allocation12 + $0x4] sm:$0xf]
    %v107 = vld [vmem:[#allocation7] sm:$0xff]
    %v108 = vld [vmem:[#allocation7 + $0x8] sm:$0xff]
    %v109 = vld [vmem:[%s1] sm:$0x3]
    %v111 = vperm.slane %v109, 0
    %v112 = vperm.slane %v109, 1
    %v117 = vunpack.c.l.b16 %v105
    %v118 = vunpack.c.l.b16 %v106
    %v119 = vpack.c.b16 %v118, %v117
    %v122 = vunpack.c.l.b16 %v107
    %v123 = vunpack.c.h.b16 %v107
    %v124 = vunpack.c.l.b16 %v108
    %v125 = vunpack.c.h.b16 %v108
    %v126 = vpack.c.b16 %v124, %v122
    %v127 = vpack.c.b16 %v125, %v123
    %vm130 = vcmask 130048
    %v132 = vsel %vm130, %v119, 0
    %134 = vmatpush.bf16.msra.mxu0 0
    %135 = vmatpush.bf16.msra.mxu0 0
    %136 = vmatpush.bf16.msra.mxu0 0
    %137 = vmatpush.bf16.msra.mxu0 0
    %138 = vmatpush.bf16.msra.mxu0 0
    %139 = vmatpush.bf16.msra.mxu0 0
    %140 = vmatpush.bf16.msra.mxu0 0
    %141 = vmatpush.bf16.msra.mxu0 %v126
    %142 = vmatmul.bf16.gmra.mxu0 %v132
    %v143 = vpop.f32.mrf.mxu0
    %v144 = vadd.f32 %v111, %v143
    %v145 = vpop.f32.mrf.mxu0
    %v146 = vadd.f32 %v111, %v145
    %147 = vdwg.mxu0
    %148 = vmatpush.bf16.msra.mxu0 0
    %149 = vmatpush.bf16.msra.mxu0 0
    %150 = vmatpush.bf16.msra.mxu0 0
    %151 = vmatpush.bf16.msra.mxu0 0
    %152 = vmatpush.bf16.msra.mxu0 0
    %153 = vmatpush.bf16.msra.mxu0 0
    %154 = vmatpush.bf16.msra.mxu0 0
    %155 = vmatpush.bf16.msra.mxu0 %v127
    %156 = vmatmul.bf16.gmra.mxu0 %v132
    %v157 = vpop.f32.mrf.mxu0
    %v158 = vadd.f32 %v112, %v157
    %v159 = vpop.f32.mrf.mxu0
    %v160 = vadd.f32 %v112, %v159
    %161 = vdwg.mxu0
    %v162 = vmax.f32 %v144, 0.0
    %v163 = vmax.f32 %v158, 0.0
    %v164 = vmax.f32 %v146, 0.0
    %v165 = vmax.f32 %v160, 0.0
    %v166 = vpack.c.bf16 %v164, %v162
    %v167 = vpack.c.bf16 %v165, %v163
    %v168 = vld [vmem:[#allocation9] sm:$0xff]
    %v169 = vld [vmem:[#allocation9 + $0x8] sm:$0xff]
    %v170 = vld [vmem:[#allocation9 + $0x10] sm:$0xff]
    %v171 = vld [vmem:[#allocation9 + $0x18] sm:$0xff]
    %v172 = vld [vmem:[#allocation9 + $0x20] sm:$0xff]
    %v173 = vld [vmem:[#allocation9 + $0x28] sm:$0xff]
    %v174 = vld [vmem:[#allocation9 + $0x30] sm:$0xff]
    %v175 = vld [vmem:[#allocation9 + $0x38] sm:$0xff]
    %v176 = vld [vmem:[#allocation9 + $0x40] sm:$0xff]
    %v177 = vld [vmem:[#allocation9 + $0x48] sm:$0xff]
    %v178 = vld [vmem:[#allocation9 + $0x50] sm:$0xff]
    %v179 = vld [vmem:[#allocation9 + $0x58] sm:$0xff]
    %v180 = vld [vmem:[#allocation9 + $0x60] sm:$0xff]
    %v181 = vld [vmem:[#allocation9 + $0x68] sm:$0xff]
    %v182 = vld [vmem:[#allocation9 + $0x70] sm:$0xff]
    %v183 = vld [vmem:[#allocation9 + $0x78] sm:$0xff]
    %v184 = vld [vmem:[#allocation9 + $0x80] sm:$0xff]
    %v185 = vld [vmem:[#allocation9 + $0x88] sm:$0xff]
    %v186 = vld [vmem:[#allocation9 + $0x90] sm:$0xff]
    %v187 = vld [vmem:[#allocation9 + $0x98] sm:$0xff]
    %v188 = vld [vmem:[#allocation9 + $0xa0] sm:$0xff]
    %v189 = vld [vmem:[#allocation9 + $0xa8] sm:$0xff]
    %v190 = vld [vmem:[#allocation9 + $0xb0] sm:$0xff]
    %v191 = vld [vmem:[#allocation9 + $0xb8] sm:$0xff]
    %v192 = vld [vmem:[#allocation9 + $0xc0] sm:$0xff]
    %v193 = vld [vmem:[#allocation9 + $0xc8] sm:$0xff]
    %v194 = vld [vmem:[#allocation9 + $0xd0] sm:$0xff]
    %v195 = vld [vmem:[#allocation9 + $0xd8] sm:$0xff]
    %v196 = vld [vmem:[#allocation9 + $0xe0] sm:$0xff]
    %v197 = vld [vmem:[#allocation9 + $0xe8] sm:$0xff]
    %v198 = vld [vmem:[#allocation9 + $0xf0] sm:$0xff]
    %v199 = vld [vmem:[#allocation9 + $0xf8] sm:$0xff]
    %v200 = vld [vmem:[%s3] sm:$0x3]
    %v202 = vperm.slane %v200, 0
    %v203 = vperm.slane %v200, 1
    %v238 = vunpack.c.l.b16 %v168
    %v239 = vunpack.c.h.b16 %v168
    %v240 = vunpack.c.l.b16 %v169
    %v241 = vunpack.c.h.b16 %v169
    %v242 = vunpack.c.l.b16 %v170
    %v243 = vunpack.c.h.b16 %v170
    %v244 = vunpack.c.l.b16 %v171
    %v245 = vunpack.c.h.b16 %v171
    %v246 = vunpack.c.l.b16 %v172
    %v247 = vunpack.c.h.b16 %v172
    %v248 = vunpack.c.l.b16 %v173
    %v249 = vunpack.c.h.b16 %v173
    %v250 = vunpack.c.l.b16 %v174
    %v251 = vunpack.c.h.b16 %v174
    %v252 = vunpack.c.l.b16 %v175
    %v253 = vunpack.c.h.b16 %v175
    %v254 = vunpack.c.l.b16 %v176
    %v255 = vunpack.c.h.b16 %v176
    %v256 = vunpack.c.l.b16 %v177
    %v257 = vunpack.c.h.b16 %v177
    %v258 = vunpack.c.l.b16 %v178
    %v259 = vunpack.c.h.b16 %v178
    %v260 = vunpack.c.l.b16 %v179
    %v261 = vunpack.c.h.b16 %v179
    %v262 = vunpack.c.l.b16 %v180
    %v263 = vunpack.c.h.b16 %v180
    %v264 = vunpack.c.l.b16 %v181
    %v265 = vunpack.c.h.b16 %v181
    %v266 = vunpack.c.l.b16 %v182
    %v267 = vunpack.c.h.b16 %v182
    %v268 = vunpack.c.l.b16 %v183
    %v269 = vunpack.c.h.b16 %v183
    %v270 = vunpack.c.l.b16 %v184
    %v271 = vunpack.c.h.b16 %v184
    %v272 = vunpack.c.l.b16 %v185
    %v273 = vunpack.c.h.b16 %v185
    %v274 = vunpack.c.l.b16 %v186
    %v275 = vunpack.c.h.b16 %v186
    %v276 = vunpack.c.l.b16 %v187
    %v277 = vunpack.c.h.b16 %v187
    %v278 = vunpack.c.l.b16 %v188
    %v279 = vunpack.c.h.b16 %v188
    %v280 = vunpack.c.l.b16 %v189
    %v281 = vunpack.c.h.b16 %v189
    %v282 = vunpack.c.l.b16 %v190
    %v283 = vunpack.c.h.b16 %v190
    %v284 = vunpack.c.l.b16 %v191
    %v285 = vunpack.c.h.b16 %v191
    %v286 = vunpack.c.l.b16 %v192
    %v287 = vunpack.c.h.b16 %v192
    %v288 = vunpack.c.l.b16 %v193
    %v289 = vunpack.c.h.b16 %v193
    %v290 = vunpack.c.l.b16 %v194
    %v291 = vunpack.c.h.b16 %v194
    %v292 = vunpack.c.l.b16 %v195
    %v293 = vunpack.c.h.b16 %v195
    %v294 = vunpack.c.l.b16 %v196
    %v295 = vunpack.c.h.b16 %v196
    %v296 = vunpack.c.l.b16 %v197
    %v297 = vunpack.c.h.b16 %v197
    %v298 = vunpack.c.l.b16 %v198
    %v299 = vunpack.c.h.b16 %v198
    %v300 = vunpack.c.l.b16 %v199
    %v301 = vunpack.c.h.b16 %v199
    %v302 = vpack.c.b16 %v240, %v238
    %v303 = vpack.c.b16 %v241, %v239
    %v304 = vpack.c.b16 %v244, %v242
    %v305 = vpack.c.b16 %v245, %v243
    %v306 = vpack.c.b16 %v248, %v246
    %v307 = vpack.c.b16 %v249, %v247
    %v308 = vpack.c.b16 %v252, %v250
    %v309 = vpack.c.b16 %v253, %v251
    %v310 = vpack.c.b16 %v256, %v254
    %v311 = vpack.c.b16 %v257, %v255
    %v312 = vpack.c.b16 %v260, %v258
    %v313 = vpack.c.b16 %v261, %v259
    %v314 = vpack.c.b16 %v264, %v262
    %v315 = vpack.c.b16 %v265, %v263
    %v316 = vpack.c.b16 %v268, %v266
    %v317 = vpack.c.b16 %v269, %v267
    %v318 = vpack.c.b16 %v272, %v270
    %v319 = vpack.c.b16 %v273, %v271
    %v320 = vpack.c.b16 %v276, %v274
    %v321 = vpack.c.b16 %v277, %v275
    %v322 = vpack.c.b16 %v280, %v278
    %v323 = vpack.c.b16 %v281, %v279
    %v324 = vpack.c.b16 %v284, %v282
    %v325 = vpack.c.b16 %v285, %v283
    %v326 = vpack.c.b16 %v288, %v286
    %v327 = vpack.c.b16 %v289, %v287
    %v328 = vpack.c.b16 %v292, %v290
    %v329 = vpack.c.b16 %v293, %v291
    %v330 = vpack.c.b16 %v296, %v294
    %v331 = vpack.c.b16 %v297, %v295
    %v332 = vpack.c.b16 %v300, %v298
    %v333 = vpack.c.b16 %v301, %v299
    %366 = vmatpush.bf16.msra.mxu0 %v316
    %367 = vmatpush.bf16.msra.mxu0 %v314
    %368 = vmatpush.bf16.msra.mxu0 %v312
    %369 = vmatpush.bf16.msra.mxu0 %v310
    %370 = vmatpush.bf16.msra.mxu0 %v308
    %371 = vmatpush.bf16.msra.mxu0 %v306
    %372 = vmatpush.bf16.msra.mxu0 %v304
    %373 = vmatpush.bf16.msra.mxu0 %v302
    %374 = vmatmul.bf16.gmra.mxu0 %v166
    %v375 = vpop.f32.mrf.mxu0
    %v376 = vadd.f32 %v202, %v375
    %v377 = vpop.f32.mrf.mxu0
    %v378 = vadd.f32 %v202, %v377
    %379 = vdwg.mxu0
    %380 = vmatpush.bf16.msra.mxu0 %v332
    %381 = vmatpush.bf16.msra.mxu0 %v330
    %382 = vmatpush.bf16.msra.mxu0 %v328
    %383 = vmatpush.bf16.msra.mxu0 %v326
    %384 = vmatpush.bf16.msra.mxu0 %v324
    %385 = vmatpush.bf16.msra.mxu0 %v322
    %386 = vmatpush.bf16.msra.mxu0 %v320
    %387 = vmatpush.bf16.msra.mxu0 %v318
    %388 = vmatmul.bf16.gmra.mxu0 %v167
    %v389 = vpop.f32.mrf.mxu0
    %v390 = vadd.f32 %v376, %v389
    %v391 = vpop.f32.mrf.mxu0
    %v392 = vadd.f32 %v378, %v391
    %393 = vdwg.mxu0
    %394 = vmatpush.bf16.msra.mxu0 %v317
    %395 = vmatpush.bf16.msra.mxu0 %v315
    %396 = vmatpush.bf16.msra.mxu0 %v313
    %397 = vmatpush.bf16.msra.mxu0 %v311
    %398 = vmatpush.bf16.msra.mxu0 %v309
    %399 = vmatpush.bf16.msra.mxu0 %v307
    %400 = vmatpush.bf16.msra.mxu0 %v305
    %401 = vmatpush.bf16.msra.mxu0 %v303
    %402 = vmatmul.bf16.gmra.mxu0 %v166
    %v403 = vpop.f32.mrf.mxu0
    %v404 = vadd.f32 %v203, %v403
    %v405 = vpop.f32.mrf.mxu0
    %v406 = vadd.f32 %v203, %v405
    %407 = vdwg.mxu0
    %408 = vmatpush.bf16.msra.mxu0 %v333
    %409 = vmatpush.bf16.msra.mxu0 %v331
    %410 = vmatpush.bf16.msra.mxu0 %v329
    %411 = vmatpush.bf16.msra.mxu0 %v327
    %412 = vmatpush.bf16.msra.mxu0 %v325
    %413 = vmatpush.bf16.msra.mxu0 %v323
    %414 = vmatpush.bf16.msra.mxu0 %v321
    %415 = vmatpush.bf16.msra.mxu0 %v319
    %416 = vmatmul.bf16.gmra.mxu0 %v167
    %v417 = vpop.f32.mrf.mxu0
    %v418 = vadd.f32 %v404, %v417
    %v419 = vpop.f32.mrf.mxu0
    %v420 = vadd.f32 %v406, %v419
    %421 = vdwg.mxu0
    %v422 = vmax.f32 %v390, 0.0
    %v423 = vmax.f32 %v418, 0.0
    %v424 = vmax.f32 %v392, 0.0
    %v425 = vmax.f32 %v420, 0.0
    %v426 = vpack.c.bf16 %v424, %v422
    %v427 = vpack.c.bf16 %v425, %v423
    %v428 = vld [vmem:[#allocation11] sm:$0xf]
    %v429 = vld [vmem:[#allocation11 + $0x4] sm:$0xf]
    %v430 = vld [vmem:[#allocation11 + $0x8] sm:$0xf]
    %v431 = vld [vmem:[#allocation11 + $0xc] sm:$0xf]
    %v432 = vld [vmem:[#allocation11 + $0x10] sm:$0xf]
    %v433 = vld [vmem:[#allocation11 + $0x14] sm:$0xf]
    %v434 = vld [vmem:[#allocation11 + $0x18] sm:$0xf]
    %v435 = vld [vmem:[#allocation11 + $0x1c] sm:$0xf]
    %v436 = vld [vmem:[#allocation11 + $0x20] sm:$0xf]
    %v437 = vld [vmem:[#allocation11 + $0x24] sm:$0xf]
    %v438 = vld [vmem:[#allocation11 + $0x28] sm:$0xf]
    %v439 = vld [vmem:[#allocation11 + $0x2c] sm:$0xf]
    %v440 = vld [vmem:[#allocation11 + $0x30] sm:$0xf]
    %v441 = vld [vmem:[#allocation11 + $0x34] sm:$0xf]
    %v442 = vld [vmem:[#allocation11 + $0x38] sm:$0xf]
    %v443 = vld [vmem:[#allocation11 + $0x3c] sm:$0xf]
    %v444 = vld [vmem:[#allocation11 + $0x40] sm:$0xf]
    %v445 = vld [vmem:[#allocation11 + $0x44] sm:$0xf]
    %v446 = vld [vmem:[#allocation11 + $0x48] sm:$0xf]
    %v447 = vld [vmem:[#allocation11 + $0x4c] sm:$0xf]
    %v448 = vld [vmem:[#allocation11 + $0x50] sm:$0xf]
    %v449 = vld [vmem:[#allocation11 + $0x54] sm:$0xf]
    %v450 = vld [vmem:[#allocation11 + $0x58] sm:$0xf]
    %v451 = vld [vmem:[#allocation11 + $0x5c] sm:$0xf]
    %v452 = vld [vmem:[#allocation11 + $0x60] sm:$0xf]
    %v453 = vld [vmem:[#allocation11 + $0x64] sm:$0xf]
    %v454 = vld [vmem:[#allocation11 + $0x68] sm:$0xf]
    %v455 = vld [vmem:[#allocation11 + $0x6c] sm:$0xf]
    %v456 = vld [vmem:[#allocation11 + $0x70] sm:$0xf]
    %v457 = vld [vmem:[#allocation11 + $0x74] sm:$0xf]
    %v458 = vld [vmem:[#allocation11 + $0x78] sm:$0xf]
    %v459 = vld [vmem:[#allocation11 + $0x7c] sm:$0xf]
    %v460 = vld [vmem:[%s5] sm:$0x1]
    %v462 = vperm.slane %v460, 0
    %v496 = vunpack.c.l.b16 %v428
    %v497 = vunpack.c.l.b16 %v429
    %v498 = vunpack.c.l.b16 %v430
    %v499 = vunpack.c.l.b16 %v431
    %v500 = vunpack.c.l.b16 %v432
    %v501 = vunpack.c.l.b16 %v433
    %v502 = vunpack.c.l.b16 %v434
    %v503 = vunpack.c.l.b16 %v435
    %v504 = vunpack.c.l.b16 %v436
    %v505 = vunpack.c.l.b16 %v437
    %v506 = vunpack.c.l.b16 %v438
    %v507 = vunpack.c.l.b16 %v439
    %v508 = vunpack.c.l.b16 %v440
    %v509 = vunpack.c.l.b16 %v441
    %v510 = vunpack.c.l.b16 %v442
    %v511 = vunpack.c.l.b16 %v443
    %v512 = vunpack.c.l.b16 %v444
    %v513 = vunpack.c.l.b16 %v445
    %v514 = vunpack.c.l.b16 %v446
    %v515 = vunpack.c.l.b16 %v447
    %v516 = vunpack.c.l.b16 %v448
    %v517 = vunpack.c.l.b16 %v449
    %v518 = vunpack.c.l.b16 %v450
    %v519 = vunpack.c.l.b16 %v451
    %v520 = vunpack.c.l.b16 %v452
    %v521 = vunpack.c.l.b16 %v453
    %v522 = vunpack.c.l.b16 %v454
    %v523 = vunpack.c.l.b16 %v455
    %v524 = vunpack.c.l.b16 %v456
    %v525 = vunpack.c.l.b16 %v457
    %v526 = vunpack.c.l.b16 %v458
    %v527 = vunpack.c.l.b16 %v459
    %v528 = vpack.c.b16 %v497, %v496
    %v529 = vpack.c.b16 %v499, %v498
    %v530 = vpack.c.b16 %v501, %v500
    %v531 = vpack.c.b16 %v503, %v502
    %v532 = vpack.c.b16 %v505, %v504
    %v533 = vpack.c.b16 %v507, %v506
    %v534 = vpack.c.b16 %v509, %v508
    %v535 = vpack.c.b16 %v511, %v510
    %v536 = vpack.c.b16 %v513, %v512
    %v537 = vpack.c.b16 %v515, %v514
    %v538 = vpack.c.b16 %v517, %v516
    %v539 = vpack.c.b16 %v519, %v518
    %v540 = vpack.c.b16 %v521, %v520
    %v541 = vpack.c.b16 %v523, %v522
    %v542 = vpack.c.b16 %v525, %v524
    %v543 = vpack.c.b16 %v527, %v526
    %560 = vmatpush.bf16.msra.mxu0 %v535
    %561 = vmatpush.bf16.msra.mxu0 %v534
    %562 = vmatpush.bf16.msra.mxu0 %v533
    %563 = vmatpush.bf16.msra.mxu0 %v532
    %564 = vmatpush.bf16.msra.mxu0 %v531
    %565 = vmatpush.bf16.msra.mxu0 %v530
    %566 = vmatpush.bf16.msra.mxu0 %v529
    %567 = vmatpush.bf16.msra.mxu0 %v528
    %568 = vmatmul.bf16.gmra.mxu0 %v426
    %v569 = vpop.f32.mrf.mxu0
    %v570 = vadd.f32 %v462, %v569
    %v571 = vpop.f32.mrf.mxu0
    %v572 = vadd.f32 %v462, %v571
    %573 = vdwg.mxu0
    %574 = vmatpush.bf16.msra.mxu0 %v543
    %575 = vmatpush.bf16.msra.mxu0 %v542
    %576 = vmatpush.bf16.msra.mxu0 %v541
    %577 = vmatpush.bf16.msra.mxu0 %v540
    %578 = vmatpush.bf16.msra.mxu0 %v539
    %579 = vmatpush.bf16.msra.mxu0 %v538
    %580 = vmatpush.bf16.msra.mxu0 %v537
    %581 = vmatpush.bf16.msra.mxu0 %v536
    %582 = vmatmul.bf16.gmra.mxu0 %v427
    %v583 = vpop.f32.mrf.mxu0
    %v584 = vadd.f32 %v570, %v583
    %v585 = vpop.f32.mrf.mxu0
    %v586 = vadd.f32 %v572, %v585
    %587 = vdwg.mxu0
    %v588 = vpack.c.bf16 %v584, %v584
    %v589 = vpack.c.bf16 %v586, %v586
    %590 = vst [vmem:[%s8] sm:$0xf] %v588
    %591 = vst [vmem:[%s8 + $0x4] sm:$0xf] %v589
    // Predicated region
    $region42: #{dqn_forward.2} parent=1 // pred_check
      _
    $region43: #{dqn_forward.2} parent=1 // pred_check_branch
      %593 = sbr.rel (0) target = $region45
    $region44: #{dqn_forward.2} parent=1 // pred_region
      _
    $region45: #{dqn_forward.2} parent=1 // pred_fallthru
      _
    // Predicated region
    $region46: #{dqn_forward.2} parent=1 // pred_check
      _
    $region47: #{dqn_forward.2} parent=1 // pred_check_branch
      %595 = sbr.rel (0) target = $region49
    $region48: #{dqn_forward.2} parent=1 // pred_region
      _
    $region49: #{dqn_forward.2} parent=1 // pred_fallthru
      _
    %596 = vsyncpa [#allocation8], 1
    %597 = vsyncpa [#allocation10], 1

</llo_original>
